<compile_context>
chip_gen: v7x
topology: tpu7x:2x2x1
jax: 0.10.0
libtpu: 0.0.40
codegen_flags: <defaults>
</compile_context>

<pallas_src>
import math

import jax
import jax.numpy as jnp
from jax.experimental import pallas as pl
from jax.experimental.pallas import tpu as pltpu


def _round_up(x, m):
    return ((x + m - 1) // m) * m


def _ceil_div(a, b):
    return (a + b - 1) // b


def _lora_kernel(x_ref, a_ref, b_ref, o_ref):
    # Cast x on the VMEM tile (cheap VPU work hidden under the DMA pipeline);
    # both matmuls accumulate in f32 on the MXU.
    x = x_ref[...].astype(a_ref.dtype)
    h = jnp.dot(x, a_ref[...], preferred_element_type=jnp.float32)
    h = h.astype(b_ref.dtype)
    y = jnp.dot(h, b_ref[...], preferred_element_type=jnp.float32)
    o_ref[...] = y.astype(o_ref.dtype)


def _maybe_single_buffered(block_shape, index_map, single_buffer):
    """BlockSpec, requesting 1-deep buffering for grid-constant weight blocks."""
    if single_buffer:
        try:
            return pl.BlockSpec(block_shape, index_map,
                                pipeline_mode=pl.Buffered(1))
        except TypeError:  # jax version without pipeline_mode on BlockSpec
            pass
    return pl.BlockSpec(block_shape, index_map)


def lora_forward(x, A, B, alpha, *, tm=512, compute_dtype=None, out_dtype=None):
    """y = alpha * (x @ A @ B).  x: [..., in_dim], A: [in_dim, r], B: [r, out_dim]."""
    orig_shape = x.shape
    in_dim, rank = A.shape
    rank_b, out_dim = B.shape
    assert rank_b == rank and orig_shape[-1] == in_dim

    x_dtype = jnp.dtype(x.dtype)
    compute_dtype = jnp.dtype(compute_dtype) if compute_dtype is not None else x_dtype
    out_dtype = jnp.dtype(out_dtype) if out_dtype is not None else x_dtype

    # Fold alpha into B once; zero-pad rank -> 128k and out_dim -> 128k
    # (value-preserving; only the small weights are touched).
    rank_pad = _round_up(rank, 128)
    out_pad = _round_up(out_dim, 128)
    A_c = A.astype(compute_dtype)
    B_c = (alpha * B.astype(jnp.float32)).astype(compute_dtype)
    if rank_pad != rank:
        A_c = jnp.pad(A_c, ((0, 0), (0, rank_pad - rank)))
        B_c = jnp.pad(B_c, ((0, rank_pad - rank), (0, 0)))
    if out_pad != out_dim:
        B_c = jnp.pad(B_c, ((0, 0), (0, out_pad - out_dim)))

    # x stays in its stored dtype; contiguous reshape costs no HBM pass.
    x2d = x.reshape(-1, in_dim)
    M = x2d.shape[0]

    x_item = x_dtype.itemsize
    c_item = compute_dtype.itemsize
    o_item = out_dtype.itemsize
    # Row tile must be a multiple of the (packed) sublane count of both the
    # input and output tiles.
    sub = max(8, 32 // x_item, 32 // o_item)

    # Per-TensorCore VMEM budget (trace-time HW query): ~48 MiB on v7x (64 MiB
    # physical), ~96 MiB on v5e/v6e (128 MiB physical).
    try:
        vmem_cap = int(pltpu.get_tpu_info().vmem_capacity_bytes)
    except Exception:
        vmem_cap = 64 * 1024 * 1024  # conservative fallback (v7x per-TC)
    budget = (vmem_cap * 3) // 4

    # Output-column tiling: a single tile unless out_pad is very large; the
    # (inner, parallel) out axis keeps tm big inside the VMEM budget while x
    # stays resident across it.
    if out_pad <= 4096:
        tn, n_out = out_pad, 1
    else:
        n_out = _ceil_div(out_pad, 2048)
        tn = _round_up(_ceil_div(out_pad, n_out), 128)
        n_out = _ceil_div(out_pad, tn)

    # Row tile from the VMEM budget (double-buffered x/out tiles, resident
    # weights, f32 intermediates), then equal-split rows so padding < sub.
    resident = 2 * (in_dim * rank_pad + rank_pad * tn) * c_item
    per_row = 2 * in_dim * x_item + 2 * tn * o_item + (rank_pad + tn) * 4
    tm_cap = max(sub, ((budget - resident) // max(per_row, 1)) // sub * sub)
    tm_req = max(sub, min(tm, tm_cap))

    if M <= sub:
        tm_eff, n_row = M, 1              # block equals full row extent
    else:
        n_row = _ceil_div(M, tm_req)
        if n_row < 2:
            n_row = 2                     # >=2 row steps: feed both v7x TCs
        tm_eff = _round_up(_ceil_div(M, n_row), sub)
        n_row = _ceil_div(M, tm_eff)

    grid = (n_row, n_out)

    cost = pl.CostEstimate(
        flops=2 * M * rank_pad * (in_dim + out_pad),
        bytes_accessed=(M * in_dim * x_item + M * out_pad * o_item
                        + in_dim * rank_pad * c_item + rank_pad * out_pad * c_item),
        transcendentals=0,
    )

    def _call(single_buffer_weights):
        in_specs = [
            pl.BlockSpec((tm_eff, in_dim), lambda i, j: (i, 0)),          # x row tile
            _maybe_single_buffered((in_dim, rank_pad), lambda i, j: (0, 0),
                                   single_buffer_weights),                # A (resident)
            _maybe_single_buffered((rank_pad, tn), lambda i, j: (0, j),
                                   single_buffer_weights and n_out == 1),  # alpha*B
        ]
        return pl.pallas_call(
            _lora_kernel,
            out_shape=jax.ShapeDtypeStruct((M, out_pad), out_dtype),
            grid_spec=pltpu.PrefetchScalarGridSpec(
                num_scalar_prefetch=0,
                grid=grid,
                in_specs=in_specs,
                out_specs=pl.BlockSpec((tm_eff, tn), lambda i, j: (i, j)),
            ),
            compiler_params=pltpu.CompilerParams(
                dimension_semantics=("parallel", "parallel"),
                vmem_limit_bytes=int(budget),
            ),
            cost_estimate=cost,
        )(x2d, A_c, B_c)

    try:
        out2d = _call(True)
    except Exception:
        out2d = _call(False)   # fall back to default double-buffered weights

    if out_pad != out_dim:
        out2d = out2d[:, :out_dim]
    return out2d.reshape(*orig_shape[:-1], out_dim)


def _kaiming_uniform(key, shape, a=math.sqrt(5)):
    # torch.nn.init.kaiming_uniform_ with a=sqrt(5): bound = gain*sqrt(3/fan_in).
    fan_in = shape[0]
    gain = math.sqrt(2.0 / (1.0 + a * a))
    bound = gain * math.sqrt(3.0 / fan_in)
    return jax.random.uniform(key, shape, jnp.float32, -bound, bound)


if __name__ == "__main__":
    batch, seq, in_dim, out_dim, rank = 2, 8, 32, 64, 8
    alpha = 4.0

    key = jax.random.PRNGKey(0)
    kx, ka, kb, kr = jax.random.split(key, 4)

    x = jax.random.normal(kx, (batch, seq, in_dim), jnp.float32)

    # Parameters exactly as in LoRALayer.__init__: A kaiming-uniform, B zeros.
    A = _kaiming_uniform(ka, (in_dim, rank))
    B = jnp.zeros((rank, out_dim), jnp.float32)

    # Init-time forward (B = 0): output must be exactly zero.
    y = lora_forward(x, A, B, alpha)
    jax.block_until_ready(y)
    ref = alpha * (x.reshape(-1, in_dim) @ A @ B).reshape(batch, seq, out_dim)
    assert y.shape == (batch, seq, out_dim)
    assert jnp.allclose(y, ref, atol=1e-5), "mismatch (B=0 case)"

    # Non-trivial weights, f32 path.
    B_nz = 0.01 * jax.random.normal(kb, (rank, out_dim), jnp.float32)
    y_nz = lora_forward(x, A, B_nz, alpha)
    jax.block_until_ready(y_nz)
    ref_nz = alpha * (x.reshape(-1, in_dim) @ A @ B_nz).reshape(batch, seq, out_dim)
    assert jnp.allclose(y_nz, ref_nz, atol=1e-4, rtol=1e-4), "mismatch (B!=0 case)"

    # Ragged row count (M=15): exercises the masked last row block (no
    # wrapper-side row padding of x).
    x_r = jax.random.normal(kr, (3, 5, in_dim), jnp.float32)
    y_r = lora_forward(x_r, A, B_nz, alpha)
    jax.block_until_ready(y_r)
    ref_r = alpha * (x_r.reshape(-1, in_dim) @ A @ B_nz).reshape(3, 5, out_dim)
    assert jnp.allclose(y_r, ref_r, atol=1e-4, rtol=1e-4), "mismatch (ragged M)"

    # Reduced-precision path: bf16 compute + bf16 output store (halves weight
    # and writeback HBM traffic; x stays f32 in HBM and is cast in-kernel).
    y_bf16 = lora_forward(x, A, B_nz, alpha,
                          compute_dtype=jnp.bfloat16, out_dtype=jnp.bfloat16)
    jax.block_until_ready(y_bf16)
    assert y_bf16.dtype == jnp.bfloat16
    assert jnp.allclose(y_bf16.astype(jnp.float32), ref_nz,
                        atol=5e-2, rtol=5e-2), "mismatch (bf16 path)"

    print("KERNEL_OK")
</pallas_src>

<mosaic_0001>
module attributes {stable_mosaic.version = 11 : i64} {
  func.func @_lora_kernel(%arg0: i32, %arg1: i32, %arg2: memref<8x32xf32, #tpu.memory_space<vmem>>, %arg3: memref<32x128xf32, #tpu.memory_space<vmem>>, %arg4: memref<128x128xf32, #tpu.memory_space<vmem>>, %arg5: memref<8x128xf32, #tpu.memory_space<vmem>>) attributes {dimension_semantics = [#tpu.dimension_semantics<parallel>, #tpu.dimension_semantics<parallel>], iteration_bounds = array<i64: 2, 1>, scalar_prefetch = 0 : i64, scratch_operands = 0 : i64, tpu.core_type = #tpu.core_type<tc>, window_params = [{transform_indices = @transform_0, window_bounds = array<i64: 8, 32>}, {pipeline_mode = #tpu.pipeline_mode<synchronous>, transform_indices = @transform_1, window_bounds = array<i64: 32, 128>}, {pipeline_mode = #tpu.pipeline_mode<synchronous>, transform_indices = @transform_2, window_bounds = array<i64: 128, 128>}, {transform_indices = @transform_3, window_bounds = array<i64: 8, 128>}]} {
    %c0 = arith.constant 0 : index
    %c0_0 = arith.constant 0 : index
    %0 = vector.load %arg2[%c0, %c0_0] : memref<8x32xf32, #tpu.memory_space<vmem>>, vector<8x32xf32>
    %c0_1 = arith.constant 0 : index
    %c0_2 = arith.constant 0 : index
    %1 = vector.load %arg3[%c0_1, %c0_2] : memref<32x128xf32, #tpu.memory_space<vmem>>, vector<32x128xf32>
    %cst = arith.constant dense<0.000000e+00> : vector<8x128xf32>
    %2 = tpu.matmul %0, %1, %cst {dimension_numbers = #tpu.dot_dimension_numbers<[1], [0], [0], [1], [0, 0, 1, 1], [], []>} : vector<8x32xf32>, vector<32x128xf32>, vector<8x128xf32> -> vector<8x128xf32>
    %c0_3 = arith.constant 0 : index
    %c0_4 = arith.constant 0 : index
    %3 = vector.load %arg4[%c0_3, %c0_4] : memref<128x128xf32, #tpu.memory_space<vmem>>, vector<128x128xf32>
    %cst_5 = arith.constant dense<0.000000e+00> : vector<8x128xf32>
    %4 = tpu.matmul %2, %3, %cst_5 {dimension_numbers = #tpu.dot_dimension_numbers<[1], [0], [0], [1], [0, 0, 1, 1], [], []>} : vector<8x128xf32>, vector<128x128xf32>, vector<8x128xf32> -> vector<8x128xf32>
    %c0_6 = arith.constant 0 : index
    %c0_7 = arith.constant 0 : index
    %5 = vector.load %arg5[%c0_6, %c0_7] : memref<8x128xf32, #tpu.memory_space<vmem>>, vector<8x128xf32>
    tpu.vector_store %arg5[%c0_6, %c0_7], %4 {strides = array<i32>} : memref<8x128xf32, #tpu.memory_space<vmem>>, vector<8x128xf32>,
    return
  }
  func.func @transform_0(%arg0: i32, %arg1: i32) -> (i32, i32) {
    %c0_i32 = arith.constant 0 : i32
    %c0_i32_0 = arith.constant 0 : i32
    return %arg0, %c0_i32 : i32, i32
  }
  func.func @transform_1(%arg0: i32, %arg1: i32) -> (i32, i32) {
    %c0_i32 = arith.constant 0 : i32
    %c0_i32_0 = arith.constant 0 : i32
    %c0_i32_1 = arith.constant 0 : i32
    return %c0_i32, %c0_i32_0 : i32, i32
  }
  func.func @transform_2(%arg0: i32, %arg1: i32) -> (i32, i32) {
    %c0_i32 = arith.constant 0 : i32
    %c0_i32_0 = arith.constant 0 : i32
    return %c0_i32, %arg1 : i32, i32
  }
  func.func @transform_3(%arg0: i32, %arg1: i32) -> (i32, i32) {
    %c0_i32 = arith.constant 0 : i32
    return %arg0, %arg1 : i32, i32
  }
}

module attributes {stable_mosaic.version = 11 : i64} {
  func.func @_lora_kernel(%arg0: i32, %arg1: i32, %arg2: memref<8x32xf32, #tpu.memory_space<vmem>>, %arg3: memref<32x128xf32, #tpu.memory_space<vmem>>, %arg4: memref<128x128xf32, #tpu.memory_space<vmem>>, %arg5: memref<8x128xf32, #tpu.memory_space<vmem>>) attributes {dimension_semantics = [#tpu.dimension_semantics<parallel>, #tpu.dimension_semantics<parallel>], iteration_bounds = array<i64: 2, 1>, scalar_prefetch = 0 : i64, scratch_operands = 0 : i64, tpu.core_type = #tpu.core_type<tc>, window_params = [{transform_indices = @transform_0, window_bounds = array<i64: 8, 32>}, {pipeline_mode = #tpu.pipeline_mode<synchronous>, transform_indices = @transform_1, window_bounds = array<i64: 32, 128>}, {transform_indices = @transform_2, window_bounds = array<i64: 128, 128>}, {transform_indices = @transform_3, window_bounds = array<i64: 8, 128>}]} {
    %c0 = arith.constant 0 : index
    %c0_0 = arith.constant 0 : index
    %0 = vector.load %arg2[%c0, %c0_0] : memref<8x32xf32, #tpu.memory_space<vmem>>, vector<8x32xf32>
    %c0_1 = arith.constant 0 : index
    %c0_2 = arith.constant 0 : index
    %1 = vector.load %arg3[%c0_1, %c0_2] : memref<32x128xf32, #tpu.memory_space<vmem>>, vector<32x128xf32>
    %cst = arith.constant dense<0.000000e+00> : vector<8x128xf32>
    %2 = tpu.matmul %0, %1, %cst {dimension_numbers = #tpu.dot_dimension_numbers<[1], [0], [0], [1], [0, 0, 1, 1], [], []>} : vector<8x32xf32>, vector<32x128xf32>, vector<8x128xf32> -> vector<8x128xf32>
    %c0_3 = arith.constant 0 : index
    %c0_4 = arith.constant 0 : index
    %3 = vector.load %arg4[%c0_3, %c0_4] : memref<128x128xf32, #tpu.memory_space<vmem>>, vector<128x128xf32>
    %cst_5 = arith.constant dense<0.000000e+00> : vector<8x128xf32>
    %4 = tpu.matmul %2, %3, %cst_5 {dimension_numbers = #tpu.dot_dimension_numbers<[1], [0], [0], [1], [0, 0, 1, 1], [], []>} : vector<8x128xf32>, vector<128x128xf32>, vector<8x128xf32> -> vector<8x128xf32>
    %c0_6 = arith.constant 0 : index
    %c0_7 = arith.constant 0 : index
    %5 = vector.load %arg5[%c0_6, %c0_7] : memref<8x128xf32, #tpu.memory_space<vmem>>, vector<8x128xf32>
    tpu.vector_store %arg5[%c0_6, %c0_7], %4 {strides = array<i32>} : memref<8x128xf32, #tpu.memory_space<vmem>>, vector<8x128xf32>,
    return
  }
  func.func @transform_0(%arg0: i32, %arg1: i32) -> (i32, i32) {
    %c0_i32 = arith.constant 0 : i32
    %c0_i32_0 = arith.constant 0 : i32
    return %arg0, %c0_i32 : i32, i32
  }
  func.func @transform_1(%arg0: i32, %arg1: i32) -> (i32, i32) {
    %c0_i32 = arith.constant 0 : i32
    %c0_i32_0 = arith.constant 0 : i32
    %c0_i32_1 = arith.constant 0 : i32
    return %c0_i32, %c0_i32_0 : i32, i32
  }
  func.func @transform_2(%arg0: i32, %arg1: i32) -> (i32, i32) {
    %c0_i32 = arith.constant 0 : i32
    %c0_i32_0 = arith.constant 0 : i32
    return %c0_i32, %arg1 : i32, i32
  }
  func.func @transform_3(%arg0: i32, %arg1: i32) -> (i32, i32) {
    %c0_i32 = arith.constant 0 : i32
    return %arg0, %arg1 : i32, i32
  }
}

</mosaic_0001>

<llo_original>
// kernel: tpu_custom_call.1
$region0: #{tpu_custom_call.1}
  #allocation0 [shape = 'u32[]', space=smem, size = 0x4, offset = 0x4, fixed_abs, tag = 'smem constant byte address 0x4 - core index']
  #allocation1 [shape = 'u32[144,128]{1,0:T(1,128)}', space=vmem, size = 0x12000, scoped, tag = 'internal scratch']
  %s0 = inlined_call_operand.hbm [shape: f32[16,32], index: 0, kind: input, shape index: {}]
  %s1 = inlined_call_operand.hbm [shape: f32[32,128], index: 1, kind: input, shape index: {}]
  %s2 = inlined_call_operand.hbm [shape: f32[128,128], index: 2, kind: input, shape index: {}]
  %s3 = inlined_call_operand.hbm [shape: f32[16,128], index: 3, kind: output, shape index: {}]
  %s4 = sld [smem:[#allocation0]]
  $region57: #{tpu_custom_call.1} parent=0
    _
  %s6 = ssub.s32 1, %s4
  %s7 = scalar_select 0, %s6, %s4
  $region1: #{tpu_custom_call.1} parent=0
    #allocation2 [shape = 'u8[8192]{0}', space=vmem, size = 0x2000, scoped, tag = 'input window, operand 0']
    #allocation3 [shape = 's32[2]{0}', space=sflag, size = 0x8, scoped, tag = 'scoped memory for tpu_custom_call.1']
    #allocation4 [shape = 's32[2]{0}', space=sflag, size = 0x8, scoped, tag = 'scoped memory for tpu_custom_call.1']
    #allocation5 [shape = 'u8[16384]{0}', space=vmem, size = 0x4000, scoped, tag = 'input window, operand 1, single buffered']
    #allocation6 [shape = 's32[1]{0}', space=sflag, size = 0x4, scoped, tag = 'scoped memory for tpu_custom_call.1']
    #allocation7 [shape = 'u8[65536]{0}', space=vmem, size = 0x10000, scoped, tag = 'input window, operand 2, single buffered']
    #allocation8 [shape = 'u8[8192]{0}', space=vmem, size = 0x2000, scoped, tag = 'output window, operand 0']
    %8 = vsyncpa [#allocation3], 0
    %s9 = scalar_lea.sflag [#allocation3], 1
    %10 = vsyncpa %s9, 0
    %11 = vsyncpa [#allocation6], 0
    %12 = vsyncpa [#allocation4], 0
    %s13 = scalar_lea.sflag [#allocation4], 1
    %14 = vsyncpa %s13, 0
    loop: start=0, step=1, limit=4
    $region2: #{tpu_custom_call.1} parent=1 // loop_pre_header
      _
    $region3: #{tpu_custom_call.1} parent=1 // loop_header
      %s16 = sphi 0, %s20
      %p17 = scmp.ge.s32.totalorder %s16, 4
      %s23 = sphi 0, %s35
      %s24 = sphi 0, %s31
      %s25 = sphi 0, %s23
      %s26 = sphi 0, %s24
      %s27 = sphi 0, %s25
      %s28 = sphi 0, %s26
      %s38 = sphi 0, %s40
      %s41 = sphi 0, %s38
      %s42 = sphi 0, %s41
      %s58 = sphi 0, %s42
      %s62 = sphi 0, %s62
      %s64 = sphi 0, %s62
      %s65 = sphi 0, %s64
      %s79 = sphi 0, %s65
      %s85 = sphi 0, %s87
      %s88 = sphi 0, %s85
      %s89 = sphi 0, %s88
      %s105 = sphi 0, %s89
      %s113 = sphi 0, %s115
      %s116 = sphi 0, %s113
      %s117 = sphi 0, %s116
      %s133 = sphi 0, %s117
    $region4: #{tpu_custom_call.1} parent=1 // loop_header_branch
      %19 = sbr.rel (%p17) target = $region8
    $region5: #{tpu_custom_call.1} parent=1 // loop_body
      %s21 = ssub.s32 %s16, 1
      %s22 = ssub.s32 %s16, 2
      %s29 = sadd.s32 1, %s24
      %p30 = scmp.ge.s32.totalorder %s29, 1
      %s31 = scalar_select %p30, 0, %s29
      %s32 = sadd.s32 1, %s23
      %s33 = scalar_select %p30, %s32, %s23
      %p34 = scmp.ge.s32.totalorder %s33, 2
      %s35 = scalar_select %p34, 0, %s33
      %s36 = ssub.s32 %s23, %s35
      %p37 = scmp.eq.s32.totalorder %s36, 0
      %s39 = sadd.s32 %s38, 1
      %s40 = scalar_select %p37, %s38, %s39
      %p43 = pneg %p37
      %p44 = scmp.eq.s32.totalorder %s16, 1
      %p45 = por %p43, %p44
      %p46 = scmp.ne.s32.totalorder %s38, %s41
      %p47 = scmp.eq.s32.totalorder %s16, 0
      %p48 = por %p46, %p47
      %p49 = scmp.ne.s32.totalorder %s38, %s41
      %p50 = scmp.eq.s32.totalorder %s21, 1
      %p51 = por %p49, %p50
      %p52 = scmp.ne.s32.totalorder %s41, %s42
      %p53 = scmp.eq.s32.totalorder %s21, 0
      %p54 = por %p52, %p53
      %p55 = scmp.ne.s32.totalorder %s41, %s42
      %p56 = scmp.eq.s32.totalorder %s22, 1
      %p57 = por %p55, %p56
      %p59 = scmp.ne.s32.totalorder %s42, %s58
      %p60 = scmp.eq.s32.totalorder %s22, 0
      %p61 = por %p59, %p60
      %s63 = sadd.s32 %s62, 1
      %p66 = scmp.eq.s32.totalorder %s16, 1
      %p67 = scmp.ne.s32.totalorder %s62, %s64
      %p68 = scmp.eq.s32.totalorder %s16, 0
      %p69 = por %p67, %p68
      %p70 = scmp.ne.s32.totalorder %s62, %s64
      %p71 = scmp.eq.s32.totalorder %s21, 1
      %p72 = por %p70, %p71
      %p73 = scmp.ne.s32.totalorder %s64, %s65
      %p74 = scmp.eq.s32.totalorder %s21, 0
      %p75 = por %p73, %p74
      %p76 = scmp.ne.s32.totalorder %s64, %s65
      %p77 = scmp.eq.s32.totalorder %s22, 1
      %p78 = por %p76, %p77
      %p80 = scmp.ne.s32.totalorder %s65, %s79
      %p81 = scmp.eq.s32.totalorder %s22, 0
      %p82 = por %p80, %p81
      %s83 = ssub.s32 %s24, %s31
      %p84 = scmp.eq.s32.totalorder %s83, 0
      %s86 = sadd.s32 %s85, 1
      %s87 = scalar_select %p84, %s85, %s86
      %p90 = pneg %p84
      %p91 = scmp.eq.s32.totalorder %s16, 1
      %p92 = por %p90, %p91
      %p93 = scmp.ne.s32.totalorder %s85, %s88
      %p94 = scmp.eq.s32.totalorder %s16, 0
      %p95 = por %p93, %p94
      %p96 = scmp.ne.s32.totalorder %s85, %s88
      %p97 = scmp.eq.s32.totalorder %s21, 1
      %p98 = por %p96, %p97
      %p99 = scmp.ne.s32.totalorder %s88, %s89
      %p100 = scmp.eq.s32.totalorder %s21, 0
      %p101 = por %p99, %p100
      %p102 = scmp.ne.s32.totalorder %s88, %s89
      %p103 = scmp.eq.s32.totalorder %s22, 1
      %p104 = por %p102, %p103
      %p106 = scmp.ne.s32.totalorder %s89, %s105
      %p107 = scmp.eq.s32.totalorder %s22, 0
      %p108 = por %p106, %p107
      %s109 = ssub.s32 %s23, %s35
      %s110 = ssub.s32 %s24, %s31
      %s111 = sor.u32 %s109, %s110
      %p112 = scmp.eq.s32.totalorder %s111, 0
      %s114 = sadd.s32 %s113, 1
      %s115 = scalar_select %p112, %s113, %s114
      %p118 = pneg %p112
      %p119 = scmp.eq.s32.totalorder %s16, 1
      %p120 = por %p118, %p119
      %p121 = scmp.ne.s32.totalorder %s113, %s116
      %p122 = scmp.eq.s32.totalorder %s16, 0
      %p123 = por %p121, %p122
      %p124 = scmp.ne.s32.totalorder %s113, %s116
      %p125 = scmp.eq.s32.totalorder %s21, 1
      %p126 = por %p124, %p125
      %p127 = scmp.ne.s32.totalorder %s116, %s117
      %p128 = scmp.eq.s32.totalorder %s21, 0
      %p129 = por %p127, %p128
      %p130 = scmp.ne.s32.totalorder %s116, %s117
      %p131 = scmp.eq.s32.totalorder %s22, 1
      %p132 = por %p130, %p131
      %p134 = scmp.ne.s32.totalorder %s117, %s133
      %p135 = scmp.eq.s32.totalorder %s22, 0
      %p136 = por %p134, %p135
      %p137 = scmp.le.s32.totalorder 1, %s16
      %p138 = scmp.lt.s32.totalorder %s16, 3
      %p139 = pnand %p137, %p138
      %p140 = pneg %p139
      // Predicated region
      $region9: #{tpu_custom_call.1} parent=5 // pred_check
        _
      $region10: #{tpu_custom_call.1} parent=5 // pred_check_branch
        %142 = sbr.rel (%p139) target = $region12
      $region11: #{tpu_custom_call.1} parent=5 // pred_region
        %s143 = ssub.s32 %s16, 1
        // Predicated region
        $region13: #{tpu_custom_call.1} parent=11 // pred_check
          %p144 = pneg %p75
        $region14: #{tpu_custom_call.1} parent=11 // pred_check_branch
          %146 = sbr.rel (%p144) target = $region16
        $region15: #{tpu_custom_call.1} parent=11 // pred_region
          %s148 = ssub.s32 512, 512
          %149 = vsyncadd [#allocation6], %s148
          %s150 = sshll.u32 [#allocation5], 4
          %s151 = int_to_ptr.vmem [resolvable:$true] %s150
          %156 = dma.hbm_to_vmem [thread:$0]  %s1, 512, %s151, [#allocation6], 128, 128, 8
        $region16: #{tpu_custom_call.1} parent=11 // pred_fallthru
          _
        // Predicated region
        $region17: #{tpu_custom_call.1} parent=11 // pred_check
          %p157 = pneg %p101
        $region18: #{tpu_custom_call.1} parent=11 // pred_check_branch
          %159 = sbr.rel (%p157) target = $region20
        $region19: #{tpu_custom_call.1} parent=11 // pred_region
          %s161 = ssub.s32 2048, 2048
          %162 = vsyncadd [#allocation6], %s161
          %s163 = smul.addr %s26, 128
          %s164 = scalar_lea.hbm %s2, %s163
          %s165 = sshll.u32 [#allocation7], 4
          %s166 = int_to_ptr.vmem [resolvable:$true] %s165
          %171 = dma.hbm_to_vmem [thread:$0]  %s164, 2048, %s166, [#allocation6], 128, 128, 8
        $region20: #{tpu_custom_call.1} parent=11 // pred_fallthru
          _
      $region12: #{tpu_custom_call.1} parent=5 // pred_fallthru
        _
      %p172 = scmp.lt.s32.totalorder %s16, 2
      // Predicated region
      $region21: #{tpu_custom_call.1} parent=5 // pred_check
        %p173 = pneg %p172
      $region22: #{tpu_custom_call.1} parent=5 // pred_check_branch
        %175 = sbr.rel (%p173) target = $region24
      $region23: #{tpu_custom_call.1} parent=5 // pred_region
        // Predicated region
        $region25: #{tpu_custom_call.1} parent=23 // pred_check
          %p176 = pneg %p48
        $region26: #{tpu_custom_call.1} parent=23 // pred_check_branch
          %178 = sbr.rel (%p176) target = $region28
        $region27: #{tpu_custom_call.1} parent=23 // pred_region
          %s179 = sand.u32 %s38, 1
          %s180 = scalar_lea.sflag [#allocation3], %s179
          %s181 = sand.u32 %s38, 1
          %s182 = smul.addr %s181, 8
          %s183 = scalar_lea.vmem [#allocation2], %s182
          %s185 = ssub.s32 128, 128
          %186 = vsyncadd %s180, %s185
          %s187 = smul.addr %s23, 128
          %s188 = scalar_lea.hbm %s0, %s187
          %s190 = sshll.u32 %s183, 4
          %s191 = int_to_ptr.vmem [resolvable:$true] %s190
          %193 = dma.hbm_to_vmem [thread:$0]  %s188, 128, %s191, %s180
        $region28: #{tpu_custom_call.1} parent=23 // pred_fallthru
          _
      $region24: #{tpu_custom_call.1} parent=5 // pred_fallthru
        _
      %p194 = scmp.le.s32.totalorder 1, %s16
      %p195 = scmp.lt.s32.totalorder %s16, 3
      %p196 = pnand %p194, %p195
      %p197 = pneg %p196
      // Predicated region
      $region29: #{tpu_custom_call.1} parent=5 // pred_check
        _
      $region30: #{tpu_custom_call.1} parent=5 // pred_check_branch
        %199 = sbr.rel (%p196) target = $region32
      $region31: #{tpu_custom_call.1} parent=5 // pred_region
        %s200 = ssub.s32 %s16, 1
        %s201 = sand.u32 %s41, 1
        %s202 = scalar_lea.sflag [#allocation3], %s201
        %s203 = sand.u32 %s41, 1
        %s204 = smul.addr %s203, 8
        %s205 = scalar_lea.vmem [#allocation2], %s204
        // Predicated region
        $region33: #{tpu_custom_call.1} parent=31 // pred_check
          %p206 = pneg %p54
        $region34: #{tpu_custom_call.1} parent=31 // pred_check_branch
          %208 = sbr.rel (%p206) target = $region36
        $region35: #{tpu_custom_call.1} parent=31 // pred_region
          %209 = dma.done %s202, 128
        $region36: #{tpu_custom_call.1} parent=31 // pred_fallthru
          _
        // Predicated region
        $region37: #{tpu_custom_call.1} parent=31 // pred_check
          %p210 = pneg %p75
        $region38: #{tpu_custom_call.1} parent=31 // pred_check_branch
          %212 = sbr.rel (%p210) target = $region40
        $region39: #{tpu_custom_call.1} parent=31 // pred_region
          %213 = dma.done [#allocation6], 512
        $region40: #{tpu_custom_call.1} parent=31 // pred_fallthru
          _
        // Predicated region
        $region41: #{tpu_custom_call.1} parent=31 // pred_check
          %p214 = pneg %p101
        $region42: #{tpu_custom_call.1} parent=31 // pred_check_branch
          %216 = sbr.rel (%p214) target = $region44
        $region43: #{tpu_custom_call.1} parent=31 // pred_region
          %217 = dma.done [#allocation6], 2048
        $region44: #{tpu_custom_call.1} parent=31 // pred_fallthru
          _
        %s218 = sand.u32 %s41, 1
        %s219 = scalar_lea.sflag [#allocation3], %s218
        %s220 = sand.u32 %s41, 1
        %s221 = smul.addr %s220, 8
        %s222 = scalar_lea.vmem [#allocation2], %s221
        %p223 = pneg %p54
        %p224 = pneg %p51
        %p225 = pneg %p75
        %p226 = pneg %p72
        %p227 = pneg %p101
        %p228 = pneg %p98
        %p229 = pneg %p129
        %p230 = pneg %p126
        %s231 = sand.u32 %s116, 1
        %s232 = scalar_lea.sflag [#allocation4], %s231
        %s233 = sand.u32 %s116, 1
        %s234 = smul.addr %s233, 8
        %s235 = scalar_lea.vmem [#allocation8], %s234
        %v236 = vld [vmem:[%s205] sm:$0xff]
        %v237 = vld [vmem:[#allocation5] sm:$0xff]
        %v238 = vld [vmem:[#allocation5 + $0x8] sm:$0xff]
        %v239 = vld [vmem:[#allocation5 + $0x10] sm:$0xff]
        %v240 = vld [vmem:[#allocation5 + $0x18] sm:$0xff]
        %vm241 = vcmask 261120
        %v243 = vsel %vm241, %v236, 0
        %245 = vmatprep.subr.mxu0 0.0
        %246 = vmatpush1.msra.mxu0 %v237
        %247 = vmatprep.subr.mxu0 0.0
        %248 = vmatpush1.msra.mxu0 %v238
        %249 = vmatprep.subr.mxu0 0.0
        %250 = vmatpush1.msra.mxu0 %v239
        %251 = vmatprep.subr.mxu0 0.0
        %252 = vmatpush1.msra.mxu0 %v240
        %253 = vmatprep.subr.mxu0 0.0
        %254 = vmatpush1.msra.mxu0 0.0
        %255 = vmatprep.subr.mxu0 0.0
        %256 = vmatpush1.msra.mxu0 0.0
        %257 = vmatprep.subr.mxu0 0.0
        %258 = vmatpush1.msra.mxu0 0.0
        %259 = vmatprep.subr.mxu0 0.0
        %260 = vmatpush1.msra.mxu0 0.0
        %261 = vmatprep.subr.mxu0 0.0
        %262 = vmatpush1.msra.mxu0 0.0
        %263 = vmatprep.subr.mxu0 0.0
        %264 = vmatpush1.msra.mxu0 0.0
        %265 = vmatprep.subr.mxu0 0.0
        %266 = vmatpush1.msra.mxu0 0.0
        %267 = vmatprep.subr.mxu0 0.0
        %268 = vmatpush1.msra.mxu0 0.0
        %269 = vmatprep.subr.mxu0 0.0
        %270 = vmatpush1.msra.mxu0 0.0
        %271 = vmatprep.subr.mxu0 0.0
        %272 = vmatpush1.msra.mxu0 0.0
        %273 = vmatprep.subr.mxu0 0.0
        %274 = vmatpush1.msra.mxu0 0.0
        %275 = vmatprep.subr.mxu0 0.0
        %276 = vmatpush1.msra.mxu0 0.0
        %277 = vmatprep.subr.mxu0 0.0
        %278 = vmatpush1.msra.mxu0 0.0
        %279 = vmatprep.subr.mxu0 0.0
        %280 = vmatpush1.msra.mxu0 0.0
        %281 = vmatprep.subr.mxu0 0.0
        %282 = vmatpush1.msra.mxu0 0.0
        %283 = vmatprep.subr.mxu0 0.0
        %284 = vmatpush1.msra.mxu0 0.0
        %285 = vmatprep.subr.mxu0 0.0
        %286 = vmatpush1.msra.mxu0 0.0
        %287 = vmatprep.subr.mxu0 0.0
        %288 = vmatpush1.msra.mxu0 0.0
        %289 = vmatprep.subr.mxu0 0.0
        %290 = vmatpush1.msra.mxu0 0.0
        %291 = vmatprep.subr.mxu0 0.0
        %292 = vmatpush1.msra.mxu0 0.0
        %293 = vmatprep.subr.mxu0 0.0
        %294 = vmatpush1.msra.mxu0 0.0
        %295 = vmatprep.subr.mxu0 0.0
        %296 = vmatpush1.msra.mxu0 0.0
        %297 = vmatprep.subr.mxu0 0.0
        %298 = vmatpush1.msra.mxu0 0.0
        %299 = vmatprep.subr.mxu0 0.0
        %300 = vmatpush1.msra.mxu0 0.0
        %301 = vmatprep.subr.mxu0 0.0
        %302 = vmatpush1.msra.mxu0 0.0
        %303 = vmatprep.subr.mxu0 0.0
        %304 = vmatpush1.msra.mxu0 0.0
        %305 = vmatprep.subr.mxu0 0.0
        %306 = vmatpush1.msra.mxu0 0.0
        %307 = vmatprep.subr.mxu0 0.0
        %308 = vmatpush1.msra.mxu0 0.0
        %309 = vmatprep.mubr.f32.mxu0 0.0
        %310 = vmatmul.mubr.f32.gmra.mrb[0].mxu0 %v243
        %v311 = vpop.f32.mrb[0].mxu0
        %v312 = vadd.f32 0.0, %v311
        %v313 = vpop.f32.mrb[0].mxu0
        %314 = vdwg.mxu0
        %v315 = vld [vmem:[#allocation7] sm:$0xff]
        %v316 = vld [vmem:[#allocation7 + $0x8] sm:$0xff]
        %v317 = vld [vmem:[#allocation7 + $0x10] sm:$0xff]
        %v318 = vld [vmem:[#allocation7 + $0x18] sm:$0xff]
        %v319 = vld [vmem:[#allocation7 + $0x20] sm:$0xff]
        %v320 = vld [vmem:[#allocation7 + $0x28] sm:$0xff]
        %v321 = vld [vmem:[#allocation7 + $0x30] sm:$0xff]
        %v322 = vld [vmem:[#allocation7 + $0x38] sm:$0xff]
        %v323 = vld [vmem:[#allocation7 + $0x40] sm:$0xff]
        %v324 = vld [vmem:[#allocation7 + $0x48] sm:$0xff]
        %v325 = vld [vmem:[#allocation7 + $0x50] sm:$0xff]
        %v326 = vld [vmem:[#allocation7 + $0x58] sm:$0xff]
        %v327 = vld [vmem:[#allocation7 + $0x60] sm:$0xff]
        %v328 = vld [vmem:[#allocation7 + $0x68] sm:$0xff]
        %v329 = vld [vmem:[#allocation7 + $0x70] sm:$0xff]
        %v330 = vld [vmem:[#allocation7 + $0x78] sm:$0xff]
        %331 = vmatprep.subr.mxu0 0.0
        %332 = vmatpush1.msra.mxu0 %v315
        %333 = vmatprep.subr.mxu0 0.0
        %334 = vmatpush1.msra.mxu0 %v316
        %335 = vmatprep.subr.mxu0 0.0
        %336 = vmatpush1.msra.mxu0 %v317
        %337 = vmatprep.subr.mxu0 0.0
        %338 = vmatpush1.msra.mxu0 %v318
        %339 = vmatprep.subr.mxu0 0.0
        %340 = vmatpush1.msra.mxu0 %v319
        %341 = vmatprep.subr.mxu0 0.0
        %342 = vmatpush1.msra.mxu0 %v320
        %343 = vmatprep.subr.mxu0 0.0
        %344 = vmatpush1.msra.mxu0 %v321
        %345 = vmatprep.subr.mxu0 0.0
        %346 = vmatpush1.msra.mxu0 %v322
        %347 = vmatprep.subr.mxu0 0.0
        %348 = vmatpush1.msra.mxu0 %v323
        %349 = vmatprep.subr.mxu0 0.0
        %350 = vmatpush1.msra.mxu0 %v324
        %351 = vmatprep.subr.mxu0 0.0
        %352 = vmatpush1.msra.mxu0 %v325
        %353 = vmatprep.subr.mxu0 0.0
        %354 = vmatpush1.msra.mxu0 %v326
        %355 = vmatprep.subr.mxu0 0.0
        %356 = vmatpush1.msra.mxu0 %v327
        %357 = vmatprep.subr.mxu0 0.0
        %358 = vmatpush1.msra.mxu0 %v328
        %359 = vmatprep.subr.mxu0 0.0
        %360 = vmatpush1.msra.mxu0 %v329
        %361 = vmatprep.subr.mxu0 0.0
        %362 = vmatpush1.msra.mxu0 %v330
        %363 = vmatprep.subr.mxu0 0.0
        %364 = vmatpush1.msra.mxu0 0.0
        %365 = vmatprep.subr.mxu0 0.0
        %366 = vmatpush1.msra.mxu0 0.0
        %367 = vmatprep.subr.mxu0 0.0
        %368 = vmatpush1.msra.mxu0 0.0
        %369 = vmatprep.subr.mxu0 0.0
        %370 = vmatpush1.msra.mxu0 0.0
        %371 = vmatprep.subr.mxu0 0.0
        %372 = vmatpush1.msra.mxu0 0.0
        %373 = vmatprep.subr.mxu0 0.0
        %374 = vmatpush1.msra.mxu0 0.0
        %375 = vmatprep.subr.mxu0 0.0
        %376 = vmatpush1.msra.mxu0 0.0
        %377 = vmatprep.subr.mxu0 0.0
        %378 = vmatpush1.msra.mxu0 0.0
        %379 = vmatprep.subr.mxu0 0.0
        %380 = vmatpush1.msra.mxu0 0.0
        %381 = vmatprep.subr.mxu0 0.0
        %382 = vmatpush1.msra.mxu0 0.0
        %383 = vmatprep.subr.mxu0 0.0
        %384 = vmatpush1.msra.mxu0 0.0
        %385 = vmatprep.subr.mxu0 0.0
        %386 = vmatpush1.msra.mxu0 0.0
        %387 = vmatprep.subr.mxu0 0.0
        %388 = vmatpush1.msra.mxu0 0.0
        %389 = vmatprep.subr.mxu0 0.0
        %390 = vmatpush1.msra.mxu0 0.0
        %391 = vmatprep.subr.mxu0 0.0
        %392 = vmatpush1.msra.mxu0 0.0
        %393 = vmatprep.subr.mxu0 0.0
        %394 = vmatpush1.msra.mxu0 0.0
        %395 = vmatprep.mubr.f32.mxu0 0.0
        %396 = vmatmul.mubr.f32.gmra.mrb[0].mxu0 %v312
        %v397 = vpop.f32.mrb[0].mxu0
        %v398 = vadd.f32 0.0, %v397
        %v399 = vpop.f32.mrb[0].mxu0
        %400 = vdwg.mxu0
        %401 = vst [vmem:[%s235] sm:$0xff] %v398
        %s402 = sand.u32 %s116, 1
        %s403 = scalar_lea.sflag [#allocation4], %s402
        %s404 = sand.u32 %s116, 1
        %s405 = smul.addr %s404, 8
        %s406 = scalar_lea.vmem [#allocation8], %s405
        // Predicated region
        $region45: #{tpu_custom_call.1} parent=31 // pred_check
          %p407 = pneg %p126
        $region46: #{tpu_custom_call.1} parent=31 // pred_check_branch
          %409 = sbr.rel (%p407) target = $region48
        $region47: #{tpu_custom_call.1} parent=31 // pred_region
          %s411 = ssub.s32 128, 128
          %412 = vsyncadd %s403, %s411
          %s413 = sadd.s32 %s26, %s25
          %s414 = smul.addr %s413, 128
          %s415 = scalar_lea.hbm %s3, %s414
          %s417 = sshll.u32 %s406, 4
          %s418 = int_to_ptr.vmem [resolvable:$true] %s417
          %420 = dma.vmem_to_hbm [thread:$0]  %s418, 128, %s415, %s403
        $region48: #{tpu_custom_call.1} parent=31 // pred_fallthru
          _
      $region32: #{tpu_custom_call.1} parent=5 // pred_fallthru
        _
      %p421 = scmp.le.s32.totalorder 2, %s16
      // Predicated region
      $region49: #{tpu_custom_call.1} parent=5 // pred_check
        %p422 = pneg %p421
      $region50: #{tpu_custom_call.1} parent=5 // pred_check_branch
        %424 = sbr.rel (%p422) target = $region52
      $region51: #{tpu_custom_call.1} parent=5 // pred_region
        %s425 = ssub.s32 %s16, 2
        // Predicated region
        $region53: #{tpu_custom_call.1} parent=51 // pred_check
          %p426 = pneg %p132
        $region54: #{tpu_custom_call.1} parent=51 // pred_check_branch
          %428 = sbr.rel (%p426) target = $region56
        $region55: #{tpu_custom_call.1} parent=51 // pred_region
          %s429 = sand.u32 %s117, 1
          %s430 = scalar_lea.sflag [#allocation4], %s429
          %s431 = sand.u32 %s117, 1
          %s432 = smul.addr %s431, 8
          %s433 = scalar_lea.vmem [#allocation8], %s432
          %434 = dma.done %s430, 128
        $region56: #{tpu_custom_call.1} parent=51 // pred_fallthru
          _
      $region52: #{tpu_custom_call.1} parent=5 // pred_fallthru
        _
    $region6: #{tpu_custom_call.1} parent=1 // loop_footer
      %s20 = sadd.s32 1, %s16
    $region7: #{tpu_custom_call.1} parent=1 // loop_footer_branch
      %15 = sbr.rel target = $region3
    $region8: #{tpu_custom_call.1} parent=1 // loop_exit
      _
    %435 = vsyncpa [#allocation3], 1
    %s436 = scalar_lea.sflag [#allocation3], 1
    %437 = vsyncpa %s436, 1
    %438 = vsyncpa [#allocation6], 1
    %439 = vsyncpa [#allocation4], 1
    %s440 = scalar_lea.sflag [#allocation4], 1
    %441 = vsyncpa %s440, 1

// kernel: tpu_custom_call.1
$region0: #{tpu_custom_call.1}
  #allocation0 [shape = 'u32[]', space=smem, size = 0x4, offset = 0x4, fixed_abs, tag = 'smem constant byte address 0x4 - core index']
  #allocation1 [shape = 'u32[144,128]{1,0:T(1,128)}', space=vmem, size = 0x12000, scoped, tag = 'internal scratch']
  %s0 = inlined_call_operand.hbm [shape: f32[16,32], index: 0, kind: input, shape index: {}]
  %s1 = inlined_call_operand.hbm [shape: f32[32,128], index: 1, kind: input, shape index: {}]
  %s2 = inlined_call_operand.hbm [shape: f32[128,128], index: 2, kind: input, shape index: {}]
  %s3 = inlined_call_operand.hbm [shape: f32[16,128], index: 3, kind: output, shape index: {}]
  %s4 = sld [smem:[#allocation0]]
  $region57: #{tpu_custom_call.1} parent=0
    _
  %s6 = ssub.s32 1, %s4
  %s7 = scalar_select 0, %s6, %s4
  $region1: #{tpu_custom_call.1} parent=0
    #allocation2 [shape = 'u8[8192]{0}', space=vmem, size = 0x2000, scoped, tag = 'input window, operand 0']
    #allocation3 [shape = 's32[2]{0}', space=sflag, size = 0x8, scoped, tag = 'scoped memory for tpu_custom_call.1']
    #allocation4 [shape = 's32[2]{0}', space=sflag, size = 0x8, scoped, tag = 'scoped memory for tpu_custom_call.1']
    #allocation5 [shape = 'u8[16384]{0}', space=vmem, size = 0x4000, scoped, tag = 'input window, operand 1, single buffered']
    #allocation6 [shape = 's32[1]{0}', space=sflag, size = 0x4, scoped, tag = 'scoped memory for tpu_custom_call.1']
    #allocation7 [shape = 'u8[65536]{0}', space=vmem, size = 0x10000, scoped, tag = 'input window, operand 2, single buffered']
    #allocation8 [shape = 'u8[8192]{0}', space=vmem, size = 0x2000, scoped, tag = 'output window, operand 0']
    %8 = vsyncpa [#allocation3], 0
    %s9 = scalar_lea.sflag [#allocation3], 1
    %10 = vsyncpa %s9, 0
    %11 = vsyncpa [#allocation6], 0
    %12 = vsyncpa [#allocation4], 0
    %s13 = scalar_lea.sflag [#allocation4], 1
    %14 = vsyncpa %s13, 0
    loop: start=0, step=1, limit=4
    $region2: #{tpu_custom_call.1} parent=1 // loop_pre_header
      _
    $region3: #{tpu_custom_call.1} parent=1 // loop_header
      %s16 = sphi 0, %s20
      %p17 = scmp.ge.s32.totalorder %s16, 4
      %s23 = sphi 0, %s35
      %s24 = sphi 0, %s31
      %s25 = sphi 0, %s23
      %s26 = sphi 0, %s24
      %s27 = sphi 0, %s25
      %s28 = sphi 0, %s26
      %s38 = sphi 0, %s40
      %s41 = sphi 0, %s38
      %s42 = sphi 0, %s41
      %s58 = sphi 0, %s42
      %s62 = sphi 0, %s62
      %s64 = sphi 0, %s62
      %s65 = sphi 0, %s64
      %s79 = sphi 0, %s65
      %s85 = sphi 0, %s87
      %s88 = sphi 0, %s85
      %s89 = sphi 0, %s88
      %s105 = sphi 0, %s89
      %s113 = sphi 0, %s115
      %s116 = sphi 0, %s113
      %s117 = sphi 0, %s116
      %s133 = sphi 0, %s117
    $region4: #{tpu_custom_call.1} parent=1 // loop_header_branch
      %19 = sbr.rel (%p17) target = $region8
    $region5: #{tpu_custom_call.1} parent=1 // loop_body
      %s21 = ssub.s32 %s16, 1
      %s22 = ssub.s32 %s16, 2
      %s29 = sadd.s32 1, %s24
      %p30 = scmp.ge.s32.totalorder %s29, 1
      %s31 = scalar_select %p30, 0, %s29
      %s32 = sadd.s32 1, %s23
      %s33 = scalar_select %p30, %s32, %s23
      %p34 = scmp.ge.s32.totalorder %s33, 2
      %s35 = scalar_select %p34, 0, %s33
      %s36 = ssub.s32 %s23, %s35
      %p37 = scmp.eq.s32.totalorder %s36, 0
      %s39 = sadd.s32 %s38, 1
      %s40 = scalar_select %p37, %s38, %s39
      %p43 = pneg %p37
      %p44 = scmp.eq.s32.totalorder %s16, 1
      %p45 = por %p43, %p44
      %p46 = scmp.ne.s32.totalorder %s38, %s41
      %p47 = scmp.eq.s32.totalorder %s16, 0
      %p48 = por %p46, %p47
      %p49 = scmp.ne.s32.totalorder %s38, %s41
      %p50 = scmp.eq.s32.totalorder %s21, 1
      %p51 = por %p49, %p50
      %p52 = scmp.ne.s32.totalorder %s41, %s42
      %p53 = scmp.eq.s32.totalorder %s21, 0
      %p54 = por %p52, %p53
      %p55 = scmp.ne.s32.totalorder %s41, %s42
      %p56 = scmp.eq.s32.totalorder %s22, 1
      %p57 = por %p55, %p56
      %p59 = scmp.ne.s32.totalorder %s42, %s58
      %p60 = scmp.eq.s32.totalorder %s22, 0
      %p61 = por %p59, %p60
      %s63 = sadd.s32 %s62, 1
      %p66 = scmp.eq.s32.totalorder %s16, 1
      %p67 = scmp.ne.s32.totalorder %s62, %s64
      %p68 = scmp.eq.s32.totalorder %s16, 0
      %p69 = por %p67, %p68
      %p70 = scmp.ne.s32.totalorder %s62, %s64
      %p71 = scmp.eq.s32.totalorder %s21, 1
      %p72 = por %p70, %p71
      %p73 = scmp.ne.s32.totalorder %s64, %s65
      %p74 = scmp.eq.s32.totalorder %s21, 0
      %p75 = por %p73, %p74
      %p76 = scmp.ne.s32.totalorder %s64, %s65
      %p77 = scmp.eq.s32.totalorder %s22, 1
      %p78 = por %p76, %p77
      %p80 = scmp.ne.s32.totalorder %s65, %s79
      %p81 = scmp.eq.s32.totalorder %s22, 0
      %p82 = por %p80, %p81
      %s83 = ssub.s32 %s24, %s31
      %p84 = scmp.eq.s32.totalorder %s83, 0
      %s86 = sadd.s32 %s85, 1
      %s87 = scalar_select %p84, %s85, %s86
      %p90 = pneg %p84
      %p91 = scmp.eq.s32.totalorder %s16, 1
      %p92 = por %p90, %p91
      %p93 = scmp.ne.s32.totalorder %s85, %s88
      %p94 = scmp.eq.s32.totalorder %s16, 0
      %p95 = por %p93, %p94
      %p96 = scmp.ne.s32.totalorder %s85, %s88
      %p97 = scmp.eq.s32.totalorder %s21, 1
      %p98 = por %p96, %p97
      %p99 = scmp.ne.s32.totalorder %s88, %s89
      %p100 = scmp.eq.s32.totalorder %s21, 0
      %p101 = por %p99, %p100
      %p102 = scmp.ne.s32.totalorder %s88, %s89
      %p103 = scmp.eq.s32.totalorder %s22, 1
      %p104 = por %p102, %p103
      %p106 = scmp.ne.s32.totalorder %s89, %s105
      %p107 = scmp.eq.s32.totalorder %s22, 0
      %p108 = por %p106, %p107
      %s109 = ssub.s32 %s23, %s35
      %s110 = ssub.s32 %s24, %s31
      %s111 = sor.u32 %s109, %s110
      %p112 = scmp.eq.s32.totalorder %s111, 0
      %s114 = sadd.s32 %s113, 1
      %s115 = scalar_select %p112, %s113, %s114
      %p118 = pneg %p112
      %p119 = scmp.eq.s32.totalorder %s16, 1
      %p120 = por %p118, %p119
      %p121 = scmp.ne.s32.totalorder %s113, %s116
      %p122 = scmp.eq.s32.totalorder %s16, 0
      %p123 = por %p121, %p122
      %p124 = scmp.ne.s32.totalorder %s113, %s116
      %p125 = scmp.eq.s32.totalorder %s21, 1
      %p126 = por %p124, %p125
      %p127 = scmp.ne.s32.totalorder %s116, %s117
      %p128 = scmp.eq.s32.totalorder %s21, 0
      %p129 = por %p127, %p128
      %p130 = scmp.ne.s32.totalorder %s116, %s117
      %p131 = scmp.eq.s32.totalorder %s22, 1
      %p132 = por %p130, %p131
      %p134 = scmp.ne.s32.totalorder %s117, %s133
      %p135 = scmp.eq.s32.totalorder %s22, 0
      %p136 = por %p134, %p135
      %p137 = scmp.le.s32.totalorder 1, %s16
      %p138 = scmp.lt.s32.totalorder %s16, 3
      %p139 = pnand %p137, %p138
      %p140 = pneg %p139
      // Predicated region
      $region9: #{tpu_custom_call.1} parent=5 // pred_check
        _
      $region10: #{tpu_custom_call.1} parent=5 // pred_check_branch
        %142 = sbr.rel (%p139) target = $region12
      $region11: #{tpu_custom_call.1} parent=5 // pred_region
        %s143 = ssub.s32 %s16, 1
        // Predicated region
        $region13: #{tpu_custom_call.1} parent=11 // pred_check
          %p144 = pneg %p75
        $region14: #{tpu_custom_call.1} parent=11 // pred_check_branch
          %146 = sbr.rel (%p144) target = $region16
        $region15: #{tpu_custom_call.1} parent=11 // pred_region
          %s148 = ssub.s32 512, 512
          %149 = vsyncadd [#allocation6], %s148
          %s150 = sshll.u32 [#allocation5], 4
          %s151 = int_to_ptr.vmem [resolvable:$true] %s150
          %156 = dma.hbm_to_vmem [thread:$0]  %s1, 512, %s151, [#allocation6], 128, 128, 8
        $region16: #{tpu_custom_call.1} parent=11 // pred_fallthru
          _
        // Predicated region
        $region17: #{tpu_custom_call.1} parent=11 // pred_check
          %p157 = pneg %p101
        $region18: #{tpu_custom_call.1} parent=11 // pred_check_branch
          %159 = sbr.rel (%p157) target = $region20
        $region19: #{tpu_custom_call.1} parent=11 // pred_region
          %s161 = ssub.s32 2048, 2048
          %162 = vsyncadd [#allocation6], %s161
          %s163 = smul.addr %s26, 128
          %s164 = scalar_lea.hbm %s2, %s163
          %s165 = sshll.u32 [#allocation7], 4
          %s166 = int_to_ptr.vmem [resolvable:$true] %s165
          %171 = dma.hbm_to_vmem [thread:$0]  %s164, 2048, %s166, [#allocation6], 128, 128, 8
        $region20: #{tpu_custom_call.1} parent=11 // pred_fallthru
          _
      $region12: #{tpu_custom_call.1} parent=5 // pred_fallthru
        _
      %p172 = scmp.lt.s32.totalorder %s16, 2
      // Predicated region
      $region21: #{tpu_custom_call.1} parent=5 // pred_check
        %p173 = pneg %p172
      $region22: #{tpu_custom_call.1} parent=5 // pred_check_branch
        %175 = sbr.rel (%p173) target = $region24
      $region23: #{tpu_custom_call.1} parent=5 // pred_region
        // Predicated region
        $region25: #{tpu_custom_call.1} parent=23 // pred_check
          %p176 = pneg %p48
        $region26: #{tpu_custom_call.1} parent=23 // pred_check_branch
          %178 = sbr.rel (%p176) target = $region28
        $region27: #{tpu_custom_call.1} parent=23 // pred_region
          %s179 = sand.u32 %s38, 1
          %s180 = scalar_lea.sflag [#allocation3], %s179
          %s181 = sand.u32 %s38, 1
          %s182 = smul.addr %s181, 8
          %s183 = scalar_lea.vmem [#allocation2], %s182
          %s185 = ssub.s32 128, 128
          %186 = vsyncadd %s180, %s185
          %s187 = smul.addr %s23, 128
          %s188 = scalar_lea.hbm %s0, %s187
          %s190 = sshll.u32 %s183, 4
          %s191 = int_to_ptr.vmem [resolvable:$true] %s190
          %193 = dma.hbm_to_vmem [thread:$0]  %s188, 128, %s191, %s180
        $region28: #{tpu_custom_call.1} parent=23 // pred_fallthru
          _
      $region24: #{tpu_custom_call.1} parent=5 // pred_fallthru
        _
      %p194 = scmp.le.s32.totalorder 1, %s16
      %p195 = scmp.lt.s32.totalorder %s16, 3
      %p196 = pnand %p194, %p195
      %p197 = pneg %p196
      // Predicated region
      $region29: #{tpu_custom_call.1} parent=5 // pred_check
        _
      $region30: #{tpu_custom_call.1} parent=5 // pred_check_branch
        %199 = sbr.rel (%p196) target = $region32
      $region31: #{tpu_custom_call.1} parent=5 // pred_region
        %s200 = ssub.s32 %s16, 1
        %s201 = sand.u32 %s41, 1
        %s202 = scalar_lea.sflag [#allocation3], %s201
        %s203 = sand.u32 %s41, 1
        %s204 = smul.addr %s203, 8
        %s205 = scalar_lea.vmem [#allocation2], %s204
        // Predicated region
        $region33: #{tpu_custom_call.1} parent=31 // pred_check
          %p206 = pneg %p54
        $region34: #{tpu_custom_call.1} parent=31 // pred_check_branch
          %208 = sbr.rel (%p206) target = $region36
        $region35: #{tpu_custom_call.1} parent=31 // pred_region
          %209 = dma.done %s202, 128
        $region36: #{tpu_custom_call.1} parent=31 // pred_fallthru
          _
        // Predicated region
        $region37: #{tpu_custom_call.1} parent=31 // pred_check
          %p210 = pneg %p75
        $region38: #{tpu_custom_call.1} parent=31 // pred_check_branch
          %212 = sbr.rel (%p210) target = $region40
        $region39: #{tpu_custom_call.1} parent=31 // pred_region
          %213 = dma.done [#allocation6], 512
        $region40: #{tpu_custom_call.1} parent=31 // pred_fallthru
          _
        // Predicated region
        $region41: #{tpu_custom_call.1} parent=31 // pred_check
          %p214 = pneg %p101
        $region42: #{tpu_custom_call.1} parent=31 // pred_check_branch
          %216 = sbr.rel (%p214) target = $region44
        $region43: #{tpu_custom_call.1} parent=31 // pred_region
          %217 = dma.done [#allocation6], 2048
        $region44: #{tpu_custom_call.1} parent=31 // pred_fallthru
          _
        %s218 = sand.u32 %s41, 1
        %s219 = scalar_lea.sflag [#allocation3], %s218
        %s220 = sand.u32 %s41, 1
        %s221 = smul.addr %s220, 8
        %s222 = scalar_lea.vmem [#allocation2], %s221
        %p223 = pneg %p54
        %p224 = pneg %p51
        %p225 = pneg %p75
        %p226 = pneg %p72
        %p227 = pneg %p101
        %p228 = pneg %p98
        %p229 = pneg %p129
        %p230 = pneg %p126
        %s231 = sand.u32 %s116, 1
        %s232 = scalar_lea.sflag [#allocation4], %s231
        %s233 = sand.u32 %s116, 1
        %s234 = smul.addr %s233, 8
        %s235 = scalar_lea.vmem [#allocation8], %s234
        %v236 = vld [vmem:[%s205] sm:$0xff]
        %v237 = vld [vmem:[#allocation5] sm:$0xff]
        %v238 = vld [vmem:[#allocation5 + $0x8] sm:$0xff]
        %v239 = vld [vmem:[#allocation5 + $0x10] sm:$0xff]
        %v240 = vld [vmem:[#allocation5 + $0x18] sm:$0xff]
        %vm241 = vcmask 261120
        %v243 = vsel %vm241, %v236, 0
        %245 = vmatprep.subr.mxu0 0.0
        %246 = vmatpush1.msra.mxu0 %v237
        %247 = vmatprep.subr.mxu0 0.0
        %248 = vmatpush1.msra.mxu0 %v238
        %249 = vmatprep.subr.mxu0 0.0
        %250 = vmatpush1.msra.mxu0 %v239
        %251 = vmatprep.subr.mxu0 0.0
        %252 = vmatpush1.msra.mxu0 %v240
        %253 = vmatprep.subr.mxu0 0.0
        %254 = vmatpush1.msra.mxu0 0.0
        %255 = vmatprep.subr.mxu0 0.0
        %256 = vmatpush1.msra.mxu0 0.0
        %257 = vmatprep.subr.mxu0 0.0
        %258 = vmatpush1.msra.mxu0 0.0
        %259 = vmatprep.subr.mxu0 0.0
        %260 = vmatpush1.msra.mxu0 0.0
        %261 = vmatprep.subr.mxu0 0.0
        %262 = vmatpush1.msra.mxu0 0.0
        %263 = vmatprep.subr.mxu0 0.0
        %264 = vmatpush1.msra.mxu0 0.0
        %265 = vmatprep.subr.mxu0 0.0
        %266 = vmatpush1.msra.mxu0 0.0
        %267 = vmatprep.subr.mxu0 0.0
        %268 = vmatpush1.msra.mxu0 0.0
        %269 = vmatprep.subr.mxu0 0.0
        %270 = vmatpush1.msra.mxu0 0.0
        %271 = vmatprep.subr.mxu0 0.0
        %272 = vmatpush1.msra.mxu0 0.0
        %273 = vmatprep.subr.mxu0 0.0
        %274 = vmatpush1.msra.mxu0 0.0
        %275 = vmatprep.subr.mxu0 0.0
        %276 = vmatpush1.msra.mxu0 0.0
        %277 = vmatprep.subr.mxu0 0.0
        %278 = vmatpush1.msra.mxu0 0.0
        %279 = vmatprep.subr.mxu0 0.0
        %280 = vmatpush1.msra.mxu0 0.0
        %281 = vmatprep.subr.mxu0 0.0
        %282 = vmatpush1.msra.mxu0 0.0
        %283 = vmatprep.subr.mxu0 0.0
        %284 = vmatpush1.msra.mxu0 0.0
        %285 = vmatprep.subr.mxu0 0.0
        %286 = vmatpush1.msra.mxu0 0.0
        %287 = vmatprep.subr.mxu0 0.0
        %288 = vmatpush1.msra.mxu0 0.0
        %289 = vmatprep.subr.mxu0 0.0
        %290 = vmatpush1.msra.mxu0 0.0
        %291 = vmatprep.subr.mxu0 0.0
        %292 = vmatpush1.msra.mxu0 0.0
        %293 = vmatprep.subr.mxu0 0.0
        %294 = vmatpush1.msra.mxu0 0.0
        %295 = vmatprep.subr.mxu0 0.0
        %296 = vmatpush1.msra.mxu0 0.0
        %297 = vmatprep.subr.mxu0 0.0
        %298 = vmatpush1.msra.mxu0 0.0
        %299 = vmatprep.subr.mxu0 0.0
        %300 = vmatpush1.msra.mxu0 0.0
        %301 = vmatprep.subr.mxu0 0.0
        %302 = vmatpush1.msra.mxu0 0.0
        %303 = vmatprep.subr.mxu0 0.0
        %304 = vmatpush1.msra.mxu0 0.0
        %305 = vmatprep.subr.mxu0 0.0
        %306 = vmatpush1.msra.mxu0 0.0
        %307 = vmatprep.subr.mxu0 0.0
        %308 = vmatpush1.msra.mxu0 0.0
        %309 = vmatprep.mubr.f32.mxu0 0.0
        %310 = vmatmul.mubr.f32.gmra.mrb[0].mxu0 %v243
        %v311 = vpop.f32.mrb[0].mxu0
        %v312 = vadd.f32 0.0, %v311
        %v313 = vpop.f32.mrb[0].mxu0
        %314 = vdwg.mxu0
        %v315 = vld [vmem:[#allocation7] sm:$0xff]
        %v316 = vld [vmem:[#allocation7 + $0x8] sm:$0xff]
        %v317 = vld [vmem:[#allocation7 + $0x10] sm:$0xff]
        %v318 = vld [vmem:[#allocation7 + $0x18] sm:$0xff]
        %v319 = vld [vmem:[#allocation7 + $0x20] sm:$0xff]
        %v320 = vld [vmem:[#allocation7 + $0x28] sm:$0xff]
        %v321 = vld [vmem:[#allocation7 + $0x30] sm:$0xff]
        %v322 = vld [vmem:[#allocation7 + $0x38] sm:$0xff]
        %v323 = vld [vmem:[#allocation7 + $0x40] sm:$0xff]
        %v324 = vld [vmem:[#allocation7 + $0x48] sm:$0xff]
        %v325 = vld [vmem:[#allocation7 + $0x50] sm:$0xff]
        %v326 = vld [vmem:[#allocation7 + $0x58] sm:$0xff]
        %v327 = vld [vmem:[#allocation7 + $0x60] sm:$0xff]
        %v328 = vld [vmem:[#allocation7 + $0x68] sm:$0xff]
        %v329 = vld [vmem:[#allocation7 + $0x70] sm:$0xff]
        %v330 = vld [vmem:[#allocation7 + $0x78] sm:$0xff]
        %331 = vmatprep.subr.mxu0 0.0
        %332 = vmatpush1.msra.mxu0 %v315
        %333 = vmatprep.subr.mxu0 0.0
        %334 = vmatpush1.msra.mxu0 %v316
        %335 = vmatprep.subr.mxu0 0.0
        %336 = vmatpush1.msra.mxu0 %v317
        %337 = vmatprep.subr.mxu0 0.0
        %338 = vmatpush1.msra.mxu0 %v318
        %339 = vmatprep.subr.mxu0 0.0
        %340 = vmatpush1.msra.mxu0 %v319
        %341 = vmatprep.subr.mxu0 0.0
        %342 = vmatpush1.msra.mxu0 %v320
        %343 = vmatprep.subr.mxu0 0.0
        %344 = vmatpush1.msra.mxu0 %v321
        %345 = vmatprep.subr.mxu0 0.0
        %346 = vmatpush1.msra.mxu0 %v322
        %347 = vmatprep.subr.mxu0 0.0
        %348 = vmatpush1.msra.mxu0 %v323
        %349 = vmatprep.subr.mxu0 0.0
        %350 = vmatpush1.msra.mxu0 %v324
        %351 = vmatprep.subr.mxu0 0.0
        %352 = vmatpush1.msra.mxu0 %v325
        %353 = vmatprep.subr.mxu0 0.0
        %354 = vmatpush1.msra.mxu0 %v326
        %355 = vmatprep.subr.mxu0 0.0
        %356 = vmatpush1.msra.mxu0 %v327
        %357 = vmatprep.subr.mxu0 0.0
        %358 = vmatpush1.msra.mxu0 %v328
        %359 = vmatprep.subr.mxu0 0.0
        %360 = vmatpush1.msra.mxu0 %v329
        %361 = vmatprep.subr.mxu0 0.0
        %362 = vmatpush1.msra.mxu0 %v330
        %363 = vmatprep.subr.mxu0 0.0
        %364 = vmatpush1.msra.mxu0 0.0
        %365 = vmatprep.subr.mxu0 0.0
        %366 = vmatpush1.msra.mxu0 0.0
        %367 = vmatprep.subr.mxu0 0.0
        %368 = vmatpush1.msra.mxu0 0.0
        %369 = vmatprep.subr.mxu0 0.0
        %370 = vmatpush1.msra.mxu0 0.0
        %371 = vmatprep.subr.mxu0 0.0
        %372 = vmatpush1.msra.mxu0 0.0
        %373 = vmatprep.subr.mxu0 0.0
        %374 = vmatpush1.msra.mxu0 0.0
        %375 = vmatprep.subr.mxu0 0.0
        %376 = vmatpush1.msra.mxu0 0.0
        %377 = vmatprep.subr.mxu0 0.0
        %378 = vmatpush1.msra.mxu0 0.0
        %379 = vmatprep.subr.mxu0 0.0
        %380 = vmatpush1.msra.mxu0 0.0
        %381 = vmatprep.subr.mxu0 0.0
        %382 = vmatpush1.msra.mxu0 0.0
        %383 = vmatprep.subr.mxu0 0.0
        %384 = vmatpush1.msra.mxu0 0.0
        %385 = vmatprep.subr.mxu0 0.0
        %386 = vmatpush1.msra.mxu0 0.0
        %387 = vmatprep.subr.mxu0 0.0
        %388 = vmatpush1.msra.mxu0 0.0
        %389 = vmatprep.subr.mxu0 0.0
        %390 = vmatpush1.msra.mxu0 0.0
        %391 = vmatprep.subr.mxu0 0.0
        %392 = vmatpush1.msra.mxu0 0.0
        %393 = vmatprep.subr.mxu0 0.0
        %394 = vmatpush1.msra.mxu0 0.0
        %395 = vmatprep.mubr.f32.mxu0 0.0
        %396 = vmatmul.mubr.f32.gmra.mrb[0].mxu0 %v312
        %v397 = vpop.f32.mrb[0].mxu0
        %v398 = vadd.f32 0.0, %v397
        %v399 = vpop.f32.mrb[0].mxu0
        %400 = vdwg.mxu0
        %401 = vst [vmem:[%s235] sm:$0xff] %v398
        %s402 = sand.u32 %s116, 1
        %s403 = scalar_lea.sflag [#allocation4], %s402
        %s404 = sand.u32 %s116, 1
        %s405 = smul.addr %s404, 8
        %s406 = scalar_lea.vmem [#allocation8], %s405
        // Predicated region
        $region45: #{tpu_custom_call.1} parent=31 // pred_check
          %p407 = pneg %p126
        $region46: #{tpu_custom_call.1} parent=31 // pred_check_branch
          %409 = sbr.rel (%p407) target = $region48
        $region47: #{tpu_custom_call.1} parent=31 // pred_region
          %s411 = ssub.s32 128, 128
          %412 = vsyncadd %s403, %s411
          %s413 = sadd.s32 %s26, %s25
          %s414 = smul.addr %s413, 128
          %s415 = scalar_lea.hbm %s3, %s414
          %s417 = sshll.u32 %s406, 4
          %s418 = int_to_ptr.vmem [resolvable:$true] %s417
          %420 = dma.vmem_to_hbm [thread:$0]  %s418, 128, %s415, %s403
        $region48: #{tpu_custom_call.1} parent=31 // pred_fallthru
          _
      $region32: #{tpu_custom_call.1} parent=5 // pred_fallthru
        _
      %p421 = scmp.le.s32.totalorder 2, %s16
      // Predicated region
      $region49: #{tpu_custom_call.1} parent=5 // pred_check
        %p422 = pneg %p421
      $region50: #{tpu_custom_call.1} parent=5 // pred_check_branch
        %424 = sbr.rel (%p422) target = $region52
      $region51: #{tpu_custom_call.1} parent=5 // pred_region
        %s425 = ssub.s32 %s16, 2
        // Predicated region
        $region53: #{tpu_custom_call.1} parent=51 // pred_check
          %p426 = pneg %p132
        $region54: #{tpu_custom_call.1} parent=51 // pred_check_branch
          %428 = sbr.rel (%p426) target = $region56
        $region55: #{tpu_custom_call.1} parent=51 // pred_region
          %s429 = sand.u32 %s117, 1
          %s430 = scalar_lea.sflag [#allocation4], %s429
          %s431 = sand.u32 %s117, 1
          %s432 = smul.addr %s431, 8
          %s433 = scalar_lea.vmem [#allocation8], %s432
          %434 = dma.done %s430, 128
        $region56: #{tpu_custom_call.1} parent=51 // pred_fallthru
          _
      $region52: #{tpu_custom_call.1} parent=5 // pred_fallthru
        _
    $region6: #{tpu_custom_call.1} parent=1 // loop_footer
      %s20 = sadd.s32 1, %s16
    $region7: #{tpu_custom_call.1} parent=1 // loop_footer_branch
      %15 = sbr.rel target = $region3
    $region8: #{tpu_custom_call.1} parent=1 // loop_exit
      _
    %435 = vsyncpa [#allocation3], 1
    %s436 = scalar_lea.sflag [#allocation3], 1
    %437 = vsyncpa %s436, 1
    %438 = vsyncpa [#allocation6], 1
    %439 = vsyncpa [#allocation4], 1
    %s440 = scalar_lea.sflag [#allocation4], 1
    %441 = vsyncpa %s440, 1

</llo_original>
